<compile_context>
chip_gen: v5e
topology: v5e:2x2
jax: 0.10.0
libtpu: 0.0.40
codegen_flags: <defaults>
</compile_context>

<pallas_src>
import math

import jax
import jax.numpy as jnp
from jax.experimental import pallas as pl
from jax.experimental.pallas import tpu as pltpu


def _round_up(x, m):
    return ((x + m - 1) // m) * m


def _pick_tile(dim, max_tile, multiple):
    """Largest multiple of `multiple` that is <= max_tile and divides `dim`.
    `dim` is itself a multiple of `multiple`, so this always terminates."""
    t = max(multiple, (min(dim, max_tile) // multiple) * multiple)
    while dim % t:
        t -= multiple
    return t


def _ensemble_linear_kernel(x_ref, w_ref, b_ref, o_ref, acc_ref):
    """One (batch-tile, out-tile) block of one ensemble member, K-tiled:
         acc += x_tile @ W_tile ;  at k == last:  o = acc + b."""
    k = pl.program_id(3)

    @pl.when(k == 0)
    def _():
        acc_ref[...] = jnp.zeros_like(acc_ref)

    acc_ref[...] += jnp.dot(x_ref[...], w_ref[...],
                            preferred_element_type=jnp.float32)

    @pl.when(k == pl.num_programs(3) - 1)
    def _():
        o_ref[...] = (acc_ref[...] + b_ref[...].astype(jnp.float32)
                      ).astype(o_ref.dtype)


def init_ensemble_params(key, in_features, out_features, ensemble_size=3):
    """PyTorch LinearEnsemble.reset_parameters(): U(-1/sqrt(in), 1/sqrt(in))."""
    std = 1.0 / math.sqrt(in_features)
    kw, kb = jax.random.split(key)
    weight = jax.random.uniform(kw, (ensemble_size, in_features, out_features),
                                jnp.float32, -std, std)
    bias = jax.random.uniform(kb, (ensemble_size, 1, out_features),
                              jnp.float32, -std, std)
    return weight, bias


def pad_ensemble_params(weight, bias, compute_dtype=jnp.float32):
    """Pad (and optionally downcast) ensemble weights ONCE, outside the
    per-step forward. Feature dims are padded to MXU-friendly lane multiples
    (128 for f32, 256 for bf16); zero padding of contraction / output lanes
    is mathematically a no-op and is sliced off after the kernel."""
    E, D, O = weight.shape
    is_bf16 = jnp.dtype(compute_dtype) == jnp.dtype(jnp.bfloat16)
    lane = 256 if is_bf16 else 128
    D_pad = _round_up(D, lane)
    O_pad = _round_up(O, lane)
    w_pad = jnp.zeros((E, D_pad, O_pad), compute_dtype)
    w_pad = w_pad.at[:, :D, :O].set(weight.astype(compute_dtype))
    # Bias stays f32: added after the f32-accumulated matmul on the VPU.
    b_pad = jnp.zeros((E, 1, O_pad), jnp.float32)
    b_pad = b_pad.at[:, :, :O].set(bias.astype(jnp.float32))
    return w_pad, b_pad


def ensemble_linear_forward(x, w_pad, b_pad, out_features, *,
                            block_b=512, block_k=512, block_o=512):
    """x: (B, D) or (E, B, D) -> (E, B, out_features) float32.

    Compute dtype (f32 / bf16) is taken from w_pad.dtype; the activation is
    cast to match, accumulation is always f32.
    """
    E, D_pad, O_pad = w_pad.shape
    compute_dtype = w_pad.dtype
    is_bf16 = jnp.dtype(compute_dtype) == jnp.dtype(jnp.bfloat16)
    lane = 256 if is_bf16 else 128     # MXU-width-aligned K/O tiles
    sub = 16 if is_bf16 else 8         # sublane packing for the batch axis

    if x.ndim == 2:
        shared_input = True
        B, D = x.shape
    elif x.ndim == 3:
        shared_input = False
        if x.shape[0] != E:
            raise ValueError("3-D input leading dim must equal ensemble size")
        B, D = x.shape[1], x.shape[2]
    else:
        raise ValueError("LinearEnsemble supports 2-D or 3-D inputs only")
    if D > D_pad:
        raise ValueError("input feature dim larger than padded weight dim")

    # Batch tiling: sublane-friendly rows, tile size bounded by block_b.
    B_pad = _round_up(max(B, sub), sub)
    tb = max(sub, (min(block_b, B_pad) // sub) * sub)
    B_pad = _round_up(B_pad, tb)
    n_bt = B_pad // tb

    # K / O tiling: tiles divide the (already lane-padded) feature dims.
    tk = _pick_tile(D_pad, block_k, lane)
    to = _pick_tile(O_pad, block_o, lane)
    n_k = D_pad // tk
    n_o = O_pad // to

    x = x.astype(compute_dtype)
    if shared_input:
        if x.shape == (B_pad, D_pad):
            x_p = x  # already aligned: skip the pad copy entirely
        else:
            x_p = jnp.zeros((B_pad, D_pad), compute_dtype).at[:B, :D].set(x)
        x_spec = pl.BlockSpec((tb, tk), lambda e, i, j, k: (i, k))
    else:
        if x.shape == (E, B_pad, D_pad):
            x_p = x
        else:
            x_p = jnp.zeros((E, B_pad, D_pad),
                            compute_dtype).at[:, :B, :D].set(x)
        x_spec = pl.BlockSpec((None, tb, tk), lambda e, i, j, k: (e, i, k))

    w_spec = pl.BlockSpec((None, tk, to), lambda e, i, j, k: (e, k, j))
    b_spec = pl.BlockSpec((None, 1, to), lambda e, i, j, k: (e, 0, j))
    o_spec = pl.BlockSpec((None, tb, to), lambda e, i, j, k: (e, i, j))

    cost = pl.CostEstimate(
        flops=2 * E * B_pad * D_pad * O_pad,
        transcendentals=0,
        bytes_accessed=int(x_p.size * x_p.dtype.itemsize
                           + w_pad.size * w_pad.dtype.itemsize
                           + b_pad.size * b_pad.dtype.itemsize
                           + E * B_pad * O_pad * 4))

    out = pl.pallas_call(
        _ensemble_linear_kernel,
        grid=(E, n_bt, n_o, n_k),
        in_specs=[x_spec, w_spec, b_spec],
        out_specs=o_spec,
        out_shape=jax.ShapeDtypeStruct((E, B_pad, O_pad), jnp.float32),
        scratch_shapes=[pltpu.VMEM((tb, to), jnp.float32)],
        compiler_params=pltpu.CompilerParams(
            dimension_semantics=("parallel", "parallel", "parallel",
                                 "arbitrary"),
            vmem_limit_bytes=48 * 1024 * 1024),
        cost_estimate=cost,
    )(x_p, w_pad, b_pad)

    return out[:, :B, :out_features]


def _reference_forward(x, weight, bias):
    if x.ndim == 2:
        x = jnp.broadcast_to(x[None], (weight.shape[0],) + x.shape)
    return jnp.einsum("ebi,eio->ebo", x, weight) + bias


if __name__ == "__main__":
    key = jax.random.PRNGKey(0)
    k_params, k_x2, k_x3, k_pm, k_xm = jax.random.split(key, 5)

    fwd = jax.jit(ensemble_linear_forward,
                  static_argnames=("out_features", "block_b", "block_k",
                                   "block_o"))

    # ---- small shapes matching the module defaults --------------------------
    ensemble_size, batch, in_features, out_features = 3, 4, 23, 5
    weight, bias = init_ensemble_params(k_params, in_features, out_features,
                                        ensemble_size)
    w_pad, b_pad = pad_ensemble_params(weight, bias)   # pad ONCE, reuse

    # 2-D input: broadcast across the ensemble (the common path).
    x2 = jax.random.normal(k_x2, (batch, in_features), jnp.float32)
    y2 = fwd(x2, w_pad, b_pad, out_features=out_features)
    jax.block_until_ready(y2)
    r2 = _reference_forward(x2, weight, bias)
    assert y2.shape == (ensemble_size, batch, out_features)
    assert jnp.allclose(y2, r2, atol=1e-4, rtol=1e-4)

    # 3-D input: per-member activations.
    x3 = jax.random.normal(k_x3, (ensemble_size, batch, in_features),
                           jnp.float32)
    y3 = fwd(x3, w_pad, b_pad, out_features=out_features)
    jax.block_until_ready(y3)
    r3 = _reference_forward(x3, weight, bias)
    assert jnp.allclose(y3, r3, atol=1e-4, rtol=1e-4)

    # ---- medium shapes that exercise batch / O / K tiling -------------------
    Em, Bm, Dm, Om = 3, 100, 300, 200
    w_m, b_m = init_ensemble_params(k_pm, Dm, Om, Em)
    w_m_pad, b_m_pad = pad_ensemble_params(w_m, b_m)
    xm = jax.random.normal(k_xm, (Bm, Dm), jnp.float32)
    ym = fwd(xm, w_m_pad, b_m_pad, out_features=Om,
             block_b=64, block_k=128, block_o=128)   # grid = (3, 2, 2, 3)
    jax.block_until_ready(ym)
    rm = _reference_forward(xm, w_m, b_m)
    assert ym.shape == (Em, Bm, Om)
    assert jnp.allclose(ym, rm, atol=1e-3, rtol=1e-3)

    # ---- bf16 weight/activation path (f32 accumulation) ---------------------
    w_bf16, b_bf16 = pad_ensemble_params(weight, bias,
                                         compute_dtype=jnp.bfloat16)
    y2_bf16 = fwd(x2, w_bf16, b_bf16, out_features=out_features)
    jax.block_until_ready(y2_bf16)
    assert jnp.allclose(y2_bf16, r2, atol=5e-2, rtol=5e-2)

    print("KERNEL_OK")
</pallas_src>

<mosaic_0001>
module attributes {stable_mosaic.version = 11 : i64} {
  func.func @_ensemble_linear_kernel(%arg0: i32, %arg1: i32, %arg2: i32, %arg3: i32, %arg4: memref<8x128xf32, #tpu.memory_space<vmem>>, %arg5: memref<1x128x128xf32, #tpu.memory_space<vmem>>, %arg6: memref<1x1x128xf32, #tpu.memory_space<vmem>>, %arg7: memref<1x8x128xf32, #tpu.memory_space<vmem>>, %arg8: memref<8x128xf32, #tpu.memory_space<vmem>>) attributes {dimension_semantics = [#tpu.dimension_semantics<parallel>, #tpu.dimension_semantics<parallel>, #tpu.dimension_semantics<parallel>, #tpu.dimension_semantics<arbitrary>], iteration_bounds = array<i64: 3, 1, 1, 1>, scalar_prefetch = 0 : i64, scratch_operands = 1 : i64, tpu.core_type = #tpu.core_type<tc>, window_params = [{transform_indices = @transform_0, window_bounds = array<i64: 8, 128>}, {transform_indices = @transform_1, window_bounds = array<i64: 1, 128, 128>}, {transform_indices = @transform_2, window_bounds = array<i64: 1, 1, 128>}, {transform_indices = @transform_3, window_bounds = array<i64: 1, 8, 128>}]} {
    %c0_i32 = arith.constant 0 : i32
    %0 = arith.cmpi eq, %arg3, %c0_i32 : i32
    %1 = arith.extui %0 : i1 to i32
    %c0_i32_0 = arith.constant 0 : i32
    %2 = arith.cmpi ne, %1, %c0_i32_0 : i32
    scf.if %2 {
      %cst_11 = arith.constant 0.000000e+00 : f32
      %13 = vector.broadcast %cst_11 : f32 to vector<8x128xf32>
      %c0_12 = arith.constant 0 : index
      %c0_13 = arith.constant 0 : index
      %14 = vector.load %arg8[%c0_12, %c0_13] : memref<8x128xf32, #tpu.memory_space<vmem>>, vector<8x128xf32>
      tpu.vector_store %arg8[%c0_12, %c0_13], %13 {strides = array<i32>} : memref<8x128xf32, #tpu.memory_space<vmem>>, vector<8x128xf32>,
    } else {
    }
    %c0 = arith.constant 0 : index
    %c0_1 = arith.constant 0 : index
    %3 = vector.load %arg8[%c0, %c0_1] : memref<8x128xf32, #tpu.memory_space<vmem>>, vector<8x128xf32>
    %c0_2 = arith.constant 0 : index
    %c0_3 = arith.constant 0 : index
    %4 = vector.load %arg4[%c0_2, %c0_3] : memref<8x128xf32, #tpu.memory_space<vmem>>, vector<8x128xf32>
    %c0_4 = arith.constant 0 : index
    %c0_5 = arith.constant 0 : index
    %c0_6 = arith.constant 0 : index
    %5 = vector.load %arg5[%c0_4, %c0_5, %c0_6] : memref<1x128x128xf32, #tpu.memory_space<vmem>>, vector<1x128x128xf32>
    %6 = vector.shape_cast %5 : vector<1x128x128xf32> to vector<128x128xf32>
    %cst = arith.constant dense<0.000000e+00> : vector<8x128xf32>
    %7 = tpu.matmul %4, %6, %cst {dimension_numbers = #tpu.dot_dimension_numbers<[1], [0], [0], [1], [0, 0, 1, 1], [], []>} : vector<8x128xf32>, vector<128x128xf32>, vector<8x128xf32> -> vector<8x128xf32>
    %8 = arith.addf %3, %7 : vector<8x128xf32>
    %c0_7 = arith.constant 0 : index
    %c0_8 = arith.constant 0 : index
    %9 = vector.load %arg8[%c0_7, %c0_8] : memref<8x128xf32, #tpu.memory_space<vmem>>, vector<8x128xf32>
    tpu.vector_store %arg8[%c0_7, %c0_8], %8 {strides = array<i32>} : memref<8x128xf32, #tpu.memory_space<vmem>>, vector<8x128xf32>,
    %c0_i32_9 = arith.constant 0 : i32
    %10 = arith.cmpi eq, %arg3, %c0_i32_9 : i32
    %11 = arith.extui %10 : i1 to i32
    %c0_i32_10 = arith.constant 0 : i32
    %12 = arith.cmpi ne, %11, %c0_i32_10 : i32
    scf.if %12 {
      %c0_11 = arith.constant 0 : index
      %c0_12 = arith.constant 0 : index
      %13 = vector.load %arg8[%c0_11, %c0_12] : memref<8x128xf32, #tpu.memory_space<vmem>>, vector<8x128xf32>
      %c0_13 = arith.constant 0 : index
      %c0_14 = arith.constant 0 : index
      %c0_15 = arith.constant 0 : index
      %14 = vector.load %arg6[%c0_13, %c0_14, %c0_15] : memref<1x1x128xf32, #tpu.memory_space<vmem>>, vector<1x1x128xf32>
      %15 = vector.shape_cast %14 : vector<1x1x128xf32> to vector<1x128xf32>
      %16 = vector.broadcast %15 : vector<1x128xf32> to vector<8x128xf32>
      %17 = arith.addf %13, %16 : vector<8x128xf32>
      %c0_16 = arith.constant 0 : index
      %c0_17 = arith.constant 0 : index
      %c0_18 = arith.constant 0 : index
      %18 = vector.load %arg7[%c0_16, %c0_17, %c0_18] : memref<1x8x128xf32, #tpu.memory_space<vmem>>, vector<1x8x128xf32>
      %19 = vector.shape_cast %18 : vector<1x8x128xf32> to vector<8x128xf32>
      %20 = vector.shape_cast %17 : vector<8x128xf32> to vector<1x8x128xf32>
      tpu.vector_store %arg7[%c0_16, %c0_17, %c0_18], %20 {strides = array<i32>} : memref<1x8x128xf32, #tpu.memory_space<vmem>>, vector<1x8x128xf32>,
    } else {
    }
    return
  }
  func.func @transform_0(%arg0: i32, %arg1: i32, %arg2: i32, %arg3: i32) -> (i32, i32) {
    %c0_i32 = arith.constant 0 : i32
    return %arg1, %arg3 : i32, i32
  }
  func.func @transform_1(%arg0: i32, %arg1: i32, %arg2: i32, %arg3: i32) -> (i32, i32, i32) {
    %c0_i32 = arith.constant 0 : i32
    return %arg0, %arg3, %arg2 : i32, i32, i32
  }
  func.func @transform_2(%arg0: i32, %arg1: i32, %arg2: i32, %arg3: i32) -> (i32, i32, i32) {
    %c0_i32 = arith.constant 0 : i32
    %c0_i32_0 = arith.constant 0 : i32
    return %arg0, %c0_i32, %arg2 : i32, i32, i32
  }
  func.func @transform_3(%arg0: i32, %arg1: i32, %arg2: i32, %arg3: i32) -> (i32, i32, i32) {
    %c0_i32 = arith.constant 0 : i32
    return %arg0, %arg1, %arg2 : i32, i32, i32
  }
}

</mosaic_0001>

<llo_original>
// kernel: ensemble_linear_forward.1
$region0: #{ensemble_linear_forward.1}
  #allocation0 [shape = 'u32[]', space=smem, size = 0x4, offset = 0x4, fixed_abs, tag = 'smem constant byte address 0x4 - core index']
  #allocation1 [shape = 'u32[72,128]{1,0:T(1,128)}', space=vmem, size = 0x9000, scoped, tag = 'internal scratch']
  #allocation2 [shape = 'f32[8,128]{1,0:T(8,128)}', space=vmem, size = 0x1000, scoped, tag = 'scratch operand']
  %s0 = inlined_call_operand.vmem [shape: f32[8,128], index: 0, kind: input, shape index: {}]
  %s1 = inlined_call_operand.hbm [shape: f32[3,128,128], index: 1, kind: input, shape index: {}]
  %s2 = inlined_call_operand.vmem [shape: f32[3,1,128], index: 2, kind: input, shape index: {}]
  %s3 = inlined_call_operand.vmem [shape: f32[3,8,128], index: 3, kind: output, shape index: {}]
  %s4 = sld [smem:[#allocation0]]
  $region57: #{ensemble_linear_forward.1} parent=0
    _
  %s6 = ssub.s32 1, %s4
  %s7 = scalar_select 0, %s6, %s4
  $region1: #{ensemble_linear_forward.1} parent=0
    #allocation3 [shape = 'u8[131072]{0}', space=vmem, size = 0x20000, scoped, tag = 'input window, operand 1']
    #allocation4 [shape = 's32[2]{0}', space=sflag, size = 0x8, scoped, tag = 'scoped memory for ensemble_linear_forward.1']
    %8 = vsyncpa [#allocation4], 0
    %s9 = scalar_lea.sflag [#allocation4], 1
    %10 = vsyncpa %s9, 0
    loop: start=0, step=1, limit=5
    $region2: #{ensemble_linear_forward.1} parent=1 // loop_pre_header
      _
    $region3: #{ensemble_linear_forward.1} parent=1 // loop_header
      %s12 = sphi 0, %s16
      %p13 = scmp.ge.s32.totalorder %s12, 5
      %s19 = sphi 0, %s45
      %s20 = sphi 0, %s41
      %s21 = sphi 0, %s37
      %s22 = sphi 0, %s33
      %s23 = sphi 0, %s19
      %s24 = sphi 0, %s20
      %s25 = sphi 0, %s21
      %s26 = sphi 0, %s22
      %s27 = sphi 0, %s23
      %s28 = sphi 0, %s24
      %s29 = sphi 0, %s25
      %s30 = sphi 0, %s26
      %s50 = sphi 0, %s52
      %s53 = sphi 0, %s50
      %s54 = sphi 0, %s53
      %s70 = sphi 0, %s54
      %s80 = sphi 0, %s82
      %s83 = sphi 0, %s80
      %s84 = sphi 0, %s83
      %s100 = sphi 0, %s84
      %s108 = sphi 0, %s110
      %s111 = sphi 0, %s108
      %s112 = sphi 0, %s111
      %s128 = sphi 0, %s112
      %s138 = sphi 0, %s140
      %s141 = sphi 0, %s138
      %s142 = sphi 0, %s141
      %s158 = sphi 0, %s142
    $region4: #{ensemble_linear_forward.1} parent=1 // loop_header_branch
      %15 = sbr.rel (%p13) target = $region8
    $region5: #{ensemble_linear_forward.1} parent=1 // loop_body
      %s17 = ssub.s32 %s12, 1
      %s18 = ssub.s32 %s12, 2
      %s31 = sadd.s32 1, %s22
      %p32 = scmp.ge.s32.totalorder %s31, 1
      %s33 = scalar_select %p32, 0, %s31
      %s34 = sadd.s32 1, %s21
      %s35 = scalar_select %p32, %s34, %s21
      %p36 = scmp.ge.s32.totalorder %s35, 1
      %s37 = scalar_select %p36, 0, %s35
      %s38 = sadd.s32 1, %s20
      %s39 = scalar_select %p36, %s38, %s20
      %p40 = scmp.ge.s32.totalorder %s39, 1
      %s41 = scalar_select %p40, 0, %s39
      %s42 = sadd.s32 1, %s19
      %s43 = scalar_select %p40, %s42, %s19
      %p44 = scmp.ge.s32.totalorder %s43, 3
      %s45 = scalar_select %p44, 0, %s43
      %s46 = ssub.s32 %s20, %s41
      %s47 = ssub.s32 %s22, %s33
      %s48 = sor.u32 %s46, %s47
      %p49 = scmp.eq.s32.totalorder %s48, 0
      %s51 = sadd.s32 %s50, 1
      %s52 = scalar_select %p49, %s50, %s51
      %p55 = pneg %p49
      %p56 = scmp.eq.s32.totalorder %s12, 2
      %p57 = por %p55, %p56
      %p58 = scmp.ne.s32.totalorder %s50, %s53
      %p59 = scmp.eq.s32.totalorder %s12, 0
      %p60 = por %p58, %p59
      %p61 = scmp.ne.s32.totalorder %s50, %s53
      %p62 = scmp.eq.s32.totalorder %s17, 2
      %p63 = por %p61, %p62
      %p64 = scmp.ne.s32.totalorder %s53, %s54
      %p65 = scmp.eq.s32.totalorder %s17, 0
      %p66 = por %p64, %p65
      %p67 = scmp.ne.s32.totalorder %s53, %s54
      %p68 = scmp.eq.s32.totalorder %s18, 2
      %p69 = por %p67, %p68
      %p71 = scmp.ne.s32.totalorder %s54, %s70
      %p72 = scmp.eq.s32.totalorder %s18, 0
      %p73 = por %p71, %p72
      %s74 = ssub.s32 %s19, %s45
      %s75 = ssub.s32 %s22, %s33
      %s76 = sor.u32 %s74, %s75
      %s77 = ssub.s32 %s21, %s37
      %s78 = sor.u32 %s76, %s77
      %p79 = scmp.eq.s32.totalorder %s78, 0
      %s81 = sadd.s32 %s80, 1
      %s82 = scalar_select %p79, %s80, %s81
      %p85 = pneg %p79
      %p86 = scmp.eq.s32.totalorder %s12, 2
      %p87 = por %p85, %p86
      %p88 = scmp.ne.s32.totalorder %s80, %s83
      %p89 = scmp.eq.s32.totalorder %s12, 0
      %p90 = por %p88, %p89
      %p91 = scmp.ne.s32.totalorder %s80, %s83
      %p92 = scmp.eq.s32.totalorder %s17, 2
      %p93 = por %p91, %p92
      %p94 = scmp.ne.s32.totalorder %s83, %s84
      %p95 = scmp.eq.s32.totalorder %s17, 0
      %p96 = por %p94, %p95
      %p97 = scmp.ne.s32.totalorder %s83, %s84
      %p98 = scmp.eq.s32.totalorder %s18, 2
      %p99 = por %p97, %p98
      %p101 = scmp.ne.s32.totalorder %s84, %s100
      %p102 = scmp.eq.s32.totalorder %s18, 0
      %p103 = por %p101, %p102
      %s104 = ssub.s32 %s19, %s45
      %s105 = ssub.s32 %s21, %s37
      %s106 = sor.u32 %s104, %s105
      %p107 = scmp.eq.s32.totalorder %s106, 0
      %s109 = sadd.s32 %s108, 1
      %s110 = scalar_select %p107, %s108, %s109
      %p113 = pneg %p107
      %p114 = scmp.eq.s32.totalorder %s12, 2
      %p115 = por %p113, %p114
      %p116 = scmp.ne.s32.totalorder %s108, %s111
      %p117 = scmp.eq.s32.totalorder %s12, 0
      %p118 = por %p116, %p117
      %p119 = scmp.ne.s32.totalorder %s108, %s111
      %p120 = scmp.eq.s32.totalorder %s17, 2
      %p121 = por %p119, %p120
      %p122 = scmp.ne.s32.totalorder %s111, %s112
      %p123 = scmp.eq.s32.totalorder %s17, 0
      %p124 = por %p122, %p123
      %p125 = scmp.ne.s32.totalorder %s111, %s112
      %p126 = scmp.eq.s32.totalorder %s18, 2
      %p127 = por %p125, %p126
      %p129 = scmp.ne.s32.totalorder %s112, %s128
      %p130 = scmp.eq.s32.totalorder %s18, 0
      %p131 = por %p129, %p130
      %s132 = ssub.s32 %s19, %s45
      %s133 = ssub.s32 %s20, %s41
      %s134 = sor.u32 %s132, %s133
      %s135 = ssub.s32 %s21, %s37
      %s136 = sor.u32 %s134, %s135
      %p137 = scmp.eq.s32.totalorder %s136, 0
      %s139 = sadd.s32 %s138, 1
      %s140 = scalar_select %p137, %s138, %s139
      %p143 = pneg %p137
      %p144 = scmp.eq.s32.totalorder %s12, 2
      %p145 = por %p143, %p144
      %p146 = scmp.ne.s32.totalorder %s138, %s141
      %p147 = scmp.eq.s32.totalorder %s12, 0
      %p148 = por %p146, %p147
      %p149 = scmp.ne.s32.totalorder %s138, %s141
      %p150 = scmp.eq.s32.totalorder %s17, 2
      %p151 = por %p149, %p150
      %p152 = scmp.ne.s32.totalorder %s141, %s142
      %p153 = scmp.eq.s32.totalorder %s17, 0
      %p154 = por %p152, %p153
      %p155 = scmp.ne.s32.totalorder %s141, %s142
      %p156 = scmp.eq.s32.totalorder %s18, 2
      %p157 = por %p155, %p156
      %p159 = scmp.ne.s32.totalorder %s142, %s158
      %p160 = scmp.eq.s32.totalorder %s18, 0
      %p161 = por %p159, %p160
      %p162 = scmp.le.s32.totalorder 1, %s12
      %p163 = scmp.lt.s32.totalorder %s12, 4
      %p164 = pnand %p162, %p163
      %p165 = pneg %p164
      // Predicated region
      $region9: #{ensemble_linear_forward.1} parent=5 // pred_check
        _
      $region10: #{ensemble_linear_forward.1} parent=5 // pred_check_branch
        %167 = sbr.rel (%p164) target = $region12
      $region11: #{ensemble_linear_forward.1} parent=5 // pred_region
        %s168 = ssub.s32 %s12, 1
        // Predicated region
        $region13: #{ensemble_linear_forward.1} parent=11 // pred_check
          %p169 = pneg %p66
        $region14: #{ensemble_linear_forward.1} parent=11 // pred_check_branch
          %171 = sbr.rel (%p169) target = $region16
        $region15: #{ensemble_linear_forward.1} parent=11 // pred_region
          %p172 = scmp.lt.s32.totalorder %s24, 0
          %s173 = scalar_select %p172, %s24, 0
          %p174 = scmp.lt.s32.totalorder %s26, 0
          %s175 = scalar_select %p174, %s26, 0
          %s176 = sadd.s32 %s175, %s173
          %s177 = smul.addr %s176, 8
          %s178 = scalar_lea.vmem %s0, %s177
        $region16: #{ensemble_linear_forward.1} parent=11 // pred_fallthru
          _
      $region12: #{ensemble_linear_forward.1} parent=5 // pred_fallthru
        _
      %p179 = scmp.lt.s32.totalorder %s12, 3
      // Predicated region
      $region17: #{ensemble_linear_forward.1} parent=5 // pred_check
        %p180 = pneg %p179
      $region18: #{ensemble_linear_forward.1} parent=5 // pred_check_branch
        %182 = sbr.rel (%p180) target = $region20
      $region19: #{ensemble_linear_forward.1} parent=5 // pred_region
        // Predicated region
        $region21: #{ensemble_linear_forward.1} parent=19 // pred_check
          %p183 = pneg %p90
        $region22: #{ensemble_linear_forward.1} parent=19 // pred_check_branch
          %185 = sbr.rel (%p183) target = $region24
        $region23: #{ensemble_linear_forward.1} parent=19 // pred_region
          %s186 = sand.u32 %s80, 1
          %s187 = scalar_lea.sflag [#allocation4], %s186
          %s188 = sand.u32 %s80, 1
          %s189 = smul.addr %s188, 128
          %s190 = scalar_lea.vmem [#allocation3], %s189
          %s191 = smul.u32 16, %s22
          %193 = vsyncadd %s187, 0
          %s194 = sadd.s32 %s21, %s191
          %s195 = smul.addr %s19, 16
          %s196 = sadd.s32 %s194, %s195
          %s197 = smul.addr %s196, 8
          %s198 = scalar_lea.hbm %s1, %s197
          %s199 = sshll.u32 %s198, 4
          %s200 = int_to_ptr.hbm [resolvable:$true] %s199
          %s201 = sshll.u32 %s190, 4
          %s202 = int_to_ptr.vmem [resolvable:$true] %s201
          %207 = dma.hbm_to_vmem [thread:$0]  %s200, 2048, %s202, %s187, 128, 128, 8
        $region24: #{ensemble_linear_forward.1} parent=19 // pred_fallthru
          _
        // Predicated region
        $region25: #{ensemble_linear_forward.1} parent=19 // pred_check
          %p208 = pneg %p118
        $region26: #{ensemble_linear_forward.1} parent=19 // pred_check_branch
          %210 = sbr.rel (%p208) target = $region28
        $region27: #{ensemble_linear_forward.1} parent=19 // pred_region
          %p211 = scmp.lt.s32.totalorder %s19, 2
          %s212 = scalar_select %p211, %s19, 2
          %p213 = scmp.lt.s32.totalorder %s21, 0
          %s214 = scalar_select %p213, %s21, 0
          %s215 = sadd.s32 %s214, %s212
          %s216 = scalar_lea.vmem %s2, %s215
        $region28: #{ensemble_linear_forward.1} parent=19 // pred_fallthru
          _
      $region20: #{ensemble_linear_forward.1} parent=5 // pred_fallthru
        _
      %p217 = scmp.le.s32.totalorder 1, %s12
      %p218 = scmp.lt.s32.totalorder %s12, 4
      %p219 = pnand %p217, %p218
      %p220 = pneg %p219
      // Predicated region
      $region29: #{ensemble_linear_forward.1} parent=5 // pred_check
        _
      $region30: #{ensemble_linear_forward.1} parent=5 // pred_check_branch
        %222 = sbr.rel (%p219) target = $region32
      $region31: #{ensemble_linear_forward.1} parent=5 // pred_region
        %s223 = ssub.s32 %s12, 1
        %s224 = sand.u32 %s83, 1
        %s225 = scalar_lea.sflag [#allocation4], %s224
        %s226 = sand.u32 %s83, 1
        %s227 = smul.addr %s226, 128
        %s228 = scalar_lea.vmem [#allocation3], %s227
        // Predicated region
        $region33: #{ensemble_linear_forward.1} parent=31 // pred_check
          %p229 = pneg %p96
        $region34: #{ensemble_linear_forward.1} parent=31 // pred_check_branch
          %231 = sbr.rel (%p229) target = $region36
        $region35: #{ensemble_linear_forward.1} parent=31 // pred_region
          %233 = dma.done %s225, 2048
        $region36: #{ensemble_linear_forward.1} parent=31 // pred_fallthru
          _
        %p234 = scmp.lt.s32.totalorder %s24, 0
        %s235 = scalar_select %p234, %s24, 0
        %p236 = scmp.lt.s32.totalorder %s26, 0
        %s237 = scalar_select %p236, %s26, 0
        %s238 = sadd.s32 %s237, %s235
        %s239 = smul.addr %s238, 8
        %s240 = scalar_lea.vmem %s0, %s239
        %p241 = pneg %p66
        %p242 = pneg %p63
        %s243 = sand.u32 %s83, 1
        %s244 = scalar_lea.sflag [#allocation4], %s243
        %s245 = sand.u32 %s83, 1
        %s246 = smul.addr %s245, 128
        %s247 = scalar_lea.vmem [#allocation3], %s246
        %p248 = pneg %p96
        %p249 = pneg %p93
        %p250 = scmp.lt.s32.totalorder %s23, 2
        %s251 = scalar_select %p250, %s23, 2
        %p252 = scmp.lt.s32.totalorder %s25, 0
        %s253 = scalar_select %p252, %s25, 0
        %s254 = sadd.s32 %s253, %s251
        %s255 = scalar_lea.vmem %s2, %s254
        %p256 = pneg %p124
        %p257 = pneg %p121
        %p258 = pneg %p154
        %p259 = pneg %p151
        %p260 = scmp.lt.s32.totalorder %s23, 2
        %s261 = scalar_select %p260, %s23, 2
        %p262 = scmp.lt.s32.totalorder %s24, 0
        %s263 = scalar_select %p262, %s24, 0
        %p264 = scmp.lt.s32.totalorder %s25, 0
        %s265 = scalar_select %p264, %s25, 0
        %s266 = sadd.s32 %s265, %s263
        %s267 = sadd.s32 %s266, %s261
        %s268 = smul.addr %s267, 8
        %s269 = scalar_lea.vmem %s3, %s268
        %p270 = scmp.lt.s32.totalorder %s24, 0
        %s271 = scalar_select %p270, %s24, 0
        %p272 = scmp.lt.s32.totalorder %s26, 0
        %s273 = scalar_select %p272, %s26, 0
        %s274 = sadd.s32 %s273, %s271
        %s275 = smul.addr %s274, 8
        %s276 = scalar_lea.vmem %s0, %s275
        %s277 = smul.u32 16, %s26
        %p278 = scmp.lt.s32.totalorder %s23, 2
        %s279 = scalar_select %p278, %s23, 2
        %p280 = scmp.lt.s32.totalorder %s25, 0
        %s281 = scalar_select %p280, %s25, 0
        %s282 = sadd.s32 %s281, %s279
        %s283 = scalar_lea.vmem %s2, %s282
        %p284 = scmp.lt.s32.totalorder %s23, 2
        %s285 = scalar_select %p284, %s23, 2
        %p286 = scmp.lt.s32.totalorder %s24, 0
        %s287 = scalar_select %p286, %s24, 0
        %p288 = scmp.lt.s32.totalorder %s25, 0
        %s289 = scalar_select %p288, %s25, 0
        %s290 = sadd.s32 %s289, %s287
        %s291 = sadd.s32 %s290, %s285
        %s292 = smul.addr %s291, 8
        %s293 = scalar_lea.vmem %s3, %s292
        %p294 = scmp.eq.s32.totalorder %s26, 0
        // Predicated region
        $region37: #{ensemble_linear_forward.1} parent=31 // pred_check
          %p295 = pneg %p294
        $region38: #{ensemble_linear_forward.1} parent=31 // pred_check_branch
          %297 = sbr.rel (%p295) target = $region40
        $region39: #{ensemble_linear_forward.1} parent=31 // pred_region
          %298 = vst [vmem:[#allocation2] sm:$0xff] 0.0
        $region40: #{ensemble_linear_forward.1} parent=31 // pred_fallthru
          _
        %v299 = vld [vmem:[#allocation2] sm:$0xff]
        %v300 = vld [vmem:[%s276] sm:$0xff]
        %v301 = vld [vmem:[%s228] sm:$0xff]
        %v302 = vld [vmem:[%s228 + $0x8] sm:$0xff]
        %v303 = vld [vmem:[%s228 + $0x10] sm:$0xff]
        %v304 = vld [vmem:[%s228 + $0x18] sm:$0xff]
        %v305 = vld [vmem:[%s228 + $0x20] sm:$0xff]
        %v306 = vld [vmem:[%s228 + $0x28] sm:$0xff]
        %v307 = vld [vmem:[%s228 + $0x30] sm:$0xff]
        %v308 = vld [vmem:[%s228 + $0x38] sm:$0xff]
        %v309 = vld [vmem:[%s228 + $0x40] sm:$0xff]
        %v310 = vld [vmem:[%s228 + $0x48] sm:$0xff]
        %v311 = vld [vmem:[%s228 + $0x50] sm:$0xff]
        %v312 = vld [vmem:[%s228 + $0x58] sm:$0xff]
        %v313 = vld [vmem:[%s228 + $0x60] sm:$0xff]
        %v314 = vld [vmem:[%s228 + $0x68] sm:$0xff]
        %v315 = vld [vmem:[%s228 + $0x70] sm:$0xff]
        %v316 = vld [vmem:[%s228 + $0x78] sm:$0xff]
        %317 = vmatpush.msra.mxu0 %v316
        %318 = vmatpush.msra.mxu0 %v315
        %319 = vmatpush.msra.mxu0 %v314
        %320 = vmatpush.msra.mxu0 %v313
        %321 = vmatpush.msra.mxu0 %v312
        %322 = vmatpush.msra.mxu0 %v311
        %323 = vmatpush.msra.mxu0 %v310
        %324 = vmatpush.msra.mxu0 %v309
        %325 = vmatpush.msra.mxu0 %v308
        %326 = vmatpush.msra.mxu0 %v307
        %327 = vmatpush.msra.mxu0 %v306
        %328 = vmatpush.msra.mxu0 %v305
        %329 = vmatpush.msra.mxu0 %v304
        %330 = vmatpush.msra.mxu0 %v303
        %331 = vmatpush.msra.mxu0 %v302
        %332 = vmatpush.msra.mxu0 %v301
        %333 = vmatmul.f32.gmra.mxu0 %v300
        %v334 = vpop.f32.mrf.mxu0
        %v335 = vadd.f32 0.0, %v334
        %336 = vdwg.mxu0
        %v337 = vadd.f32 %v299, %v335
        %338 = vst [vmem:[#allocation2] sm:$0xff] %v337
        // Predicated region
        $region41: #{ensemble_linear_forward.1} parent=31 // pred_check
          %p339 = pneg %p294
        $region42: #{ensemble_linear_forward.1} parent=31 // pred_check_branch
          %341 = sbr.rel (%p339) target = $region44
        $region43: #{ensemble_linear_forward.1} parent=31 // pred_region
          %v342 = vld [vmem:[#allocation2] sm:$0xff]
          %v343 = vld [vmem:[%s283] sm:$0x1]
          %v345 = vperm.slane %v343, 0
          %v347 = vadd.f32 %v342, %v345
          %348 = vst [vmem:[%s293] sm:$0xff] %v347
        $region44: #{ensemble_linear_forward.1} parent=31 // pred_fallthru
          _
        %p349 = scmp.lt.s32.totalorder %s23, 2
        %s350 = scalar_select %p349, %s23, 2
        %p351 = scmp.lt.s32.totalorder %s24, 0
        %s352 = scalar_select %p351, %s24, 0
        %p353 = scmp.lt.s32.totalorder %s25, 0
        %s354 = scalar_select %p353, %s25, 0
        %s355 = sadd.s32 %s354, %s352
        %s356 = sadd.s32 %s355, %s350
        %s357 = smul.addr %s356, 8
        %s358 = scalar_lea.vmem %s3, %s357
        // Predicated region
        $region45: #{ensemble_linear_forward.1} parent=31 // pred_check
          %p359 = pneg %p151
        $region46: #{ensemble_linear_forward.1} parent=31 // pred_check_branch
          %361 = sbr.rel (%p359) target = $region48
        $region47: #{ensemble_linear_forward.1} parent=31 // pred_region
          _
        $region48: #{ensemble_linear_forward.1} parent=31 // pred_fallthru
          _
      $region32: #{ensemble_linear_forward.1} parent=5 // pred_fallthru
        _
      %p362 = scmp.le.s32.totalorder 2, %s12
      // Predicated region
      $region49: #{ensemble_linear_forward.1} parent=5 // pred_check
        %p363 = pneg %p362
      $region50: #{ensemble_linear_forward.1} parent=5 // pred_check_branch
        %365 = sbr.rel (%p363) target = $region52
      $region51: #{ensemble_linear_forward.1} parent=5 // pred_region
        %s366 = ssub.s32 %s12, 2
        // Predicated region
        $region53: #{ensemble_linear_forward.1} parent=51 // pred_check
          %p367 = pneg %p157
        $region54: #{ensemble_linear_forward.1} parent=51 // pred_check_branch
          %369 = sbr.rel (%p367) target = $region56
        $region55: #{ensemble_linear_forward.1} parent=51 // pred_region
          %p370 = scmp.lt.s32.totalorder %s27, 2
          %s371 = scalar_select %p370, %s27, 2
          %p372 = scmp.lt.s32.totalorder %s28, 0
          %s373 = scalar_select %p372, %s28, 0
          %p374 = scmp.lt.s32.totalorder %s29, 0
          %s375 = scalar_select %p374, %s29, 0
          %s376 = sadd.s32 %s375, %s373
          %s377 = sadd.s32 %s376, %s371
          %s378 = smul.addr %s377, 8
          %s379 = scalar_lea.vmem %s3, %s378
        $region56: #{ensemble_linear_forward.1} parent=51 // pred_fallthru
          _
      $region52: #{ensemble_linear_forward.1} parent=5 // pred_fallthru
        _
    $region6: #{ensemble_linear_forward.1} parent=1 // loop_footer
      %s16 = sadd.s32 1, %s12
    $region7: #{ensemble_linear_forward.1} parent=1 // loop_footer_branch
      %11 = sbr.rel target = $region3
    $region8: #{ensemble_linear_forward.1} parent=1 // loop_exit
      _
    %380 = vsyncpa [#allocation4], 1
    %s381 = scalar_lea.sflag [#allocation4], 1
    %382 = vsyncpa %s381, 1

</llo_original>
